<compile_context>
chip_gen: v7x
topology: tpu7x:2x2x1
jax: 0.10.0
libtpu: 0.0.40
codegen_flags: <defaults>
</compile_context>

<pallas_src>
import functools

import jax
import jax.numpy as jnp
from jax.experimental import pallas as pl
from jax.experimental.pallas import tpu as pltpu

_LANES = 128
_SUBLANES = 8
_CHUNK_ROWS = 256           # fori chunk: (256, 128) f32 = 128 KiB per operand
_MAX_TILE_ROWS = 8192       # (8192, 128) f32 = 4 MiB per input block
_VMEM_LIMIT_BYTES = 32 * 1024 * 1024


def _round_up(a, b):
    return -(-a // b) * b


def _bce_partial_kernel(x_ref, t_ref, o_ref, *, chunk_rows, num_chunks,
                        rem_elems, mask_last):
    """One grid step: fold a (tile_rows, 128) tile of stable BCE-with-logits
    losses into an (8, 128) partial sum.  Pure VPU/EUP streaming, no MXU."""

    def tile_sum(apply_mask):
        def body(c, acc):
            r0 = c * chunk_rows
            sl = pl.ds(pl.multiple_of(r0, chunk_rows), chunk_rows)
            x = x_ref[sl, :].astype(jnp.float32)
            t = t_ref[sl, :].astype(jnp.float32)
            # Numerically stable BCE with logits (matches torch.nn.BCEWithLogitsLoss).
            loss = jnp.maximum(x, 0.0) - x * t + jnp.log1p(jnp.exp(-jnp.abs(x)))
            if apply_mask:
                # Zero padded / ragged-tail / uninitialised elements.  Indices
                # are tile-local (< tile_rows*128 <= 2**20) so int32 is safe.
                row = r0 + jax.lax.broadcasted_iota(jnp.int32, loss.shape, 0)
                lane = jax.lax.broadcasted_iota(jnp.int32, loss.shape, 1)
                loss = jnp.where(row * _LANES + lane < rem_elems, loss, 0.0)
            # Fold chunk rows into the (8, 128) accumulator: vreg-aligned
            # reshape + elementwise adds only (no per-step cross-lane reduce).
            return acc + loss.reshape(chunk_rows // _SUBLANES, _SUBLANES,
                                      _LANES).sum(axis=0)

        return jax.lax.fori_loop(0, num_chunks, body,
                                 jnp.zeros((_SUBLANES, _LANES), jnp.float32))

    if mask_last:
        last = pl.num_programs(0) - 1

        @pl.when(pl.program_id(0) != last)
        def _():
            o_ref[...] = tile_sum(False)

        @pl.when(pl.program_id(0) == last)
        def _():
            o_ref[...] = tile_sum(True)
    else:
        o_ref[...] = tile_sum(False)


def bce_with_logits_mean(logits, target):
    """Mean-reduced BCEWithLogits over all elements, computed in Pallas."""
    x = jnp.ravel(logits)
    t = jnp.ravel(target)
    assert x.size == t.size, "squeezed input and target must have the same size"
    n = int(x.size)
    assert n > 0

    # ---- static tiling --------------------------------------------------
    rows = -(-n // _LANES)                      # rows of the (rows, 128) view
    if rows <= _CHUNK_ROWS:
        tile_rows = _round_up(rows, _SUBLANES)  # one small tile, one chunk
        chunk_rows = tile_rows
    else:
        # >= 2 balanced tiles so the "parallel" axis can feed both v7x
        # TensorCores; tile_rows is a multiple of the fori chunk size.
        tile_rows = min(_MAX_TILE_ROWS,
                        _round_up(rows, 2 * _CHUNK_ROWS) // 2)
        chunk_rows = _CHUNK_ROWS
    num_tiles = -(-rows // tile_rows)
    num_chunks = tile_rows // chunk_rows
    covered = num_tiles * tile_rows * _LANES
    mask_last = n < covered
    rem_elems = n - (num_tiles - 1) * tile_rows * _LANES  # valid in last tile

    # ---- dtypes: stream narrow, upcast in-kernel --------------------------
    if not jnp.issubdtype(x.dtype, jnp.floating):
        x = x.astype(jnp.float32)
    elif x.dtype == jnp.float64:
        x = x.astype(jnp.float32)

    if jnp.issubdtype(t.dtype, jnp.floating):
        if t.dtype == jnp.float64:
            t = t.astype(jnp.float32)           # no f64 on TPU
    elif t.dtype == jnp.bool_ and tile_rows % 32 == 0:
        t = t.astype(jnp.int8)                  # 1 B/elem stream; in-kernel upcast
    elif t.dtype in (jnp.int8, jnp.uint8) and tile_rows % 32 == 0:
        pass                                    # stream hard labels natively
    else:
        t = t.astype(jnp.float32)               # matches torch `target.float()`

    # ---- lane-dense (rows, 128) view --------------------------------------
    # Free (metadata-only reshape) whenever n % 128 == 0.  Only misaligned
    # element counts pay one small pad copy; padded zeros and the row-ragged
    # final block are both zeroed by the last-tile mask.
    pad = rows * _LANES - n
    if pad:
        x = jnp.pad(x, (0, pad))
        t = jnp.pad(t, (0, pad))
    x2 = x.reshape(rows, _LANES)
    t2 = t.reshape(rows, _LANES)

    in_spec = pl.BlockSpec((tile_rows, _LANES), lambda i: (i, 0))
    out_spec = pl.BlockSpec((_SUBLANES, _LANES), lambda i: (i, 0))

    partials = pl.pallas_call(
        functools.partial(
            _bce_partial_kernel,
            chunk_rows=chunk_rows,
            num_chunks=num_chunks,
            rem_elems=rem_elems,
            mask_last=mask_last,
        ),
        out_shape=jax.ShapeDtypeStruct((num_tiles * _SUBLANES, _LANES),
                                       jnp.float32),
        grid_spec=pltpu.PrefetchScalarGridSpec(
            num_scalar_prefetch=0,
            grid=(num_tiles,),
            in_specs=[in_spec, in_spec],
            out_specs=out_spec,
        ),
        compiler_params=pltpu.CompilerParams(
            dimension_semantics=("parallel",),
            vmem_limit_bytes=_VMEM_LIMIT_BYTES,
        ),
    )(x2, t2)

    # Tiny epilogue: sum per-tile (8,128) partials and divide by true count.
    return jnp.sum(partials) / jnp.float32(n)


class BCEWithLogitsLoss:
    """JAX/Pallas port of the PyTorch module (reduction='mean')."""

    def __init__(self, reduction="mean", weight=None):
        # TODO(synk): only reduction='mean' (the module default) is implemented;
        # `weight` is accepted for API parity but unused, as in the original.
        assert reduction == "mean"

    def __call__(self, inputs, target):
        x = jnp.squeeze(inputs["prediction_out"])   # matches torch .squeeze()
        return {"target_loss": bce_with_logits_mean(x, target)}


if __name__ == "__main__":
    def _ref_loss(logits, target):
        xr = jnp.squeeze(logits).astype(jnp.float32)
        tr = target.astype(jnp.float32)
        return jnp.mean(jnp.maximum(xr, 0.0) - xr * tr
                        + jnp.log1p(jnp.exp(-jnp.abs(xr))))

    key = jax.random.PRNGKey(0)
    k1, k2, k3, k4, k5, k6 = jax.random.split(key, 6)
    module = BCEWithLogitsLoss(reduction="mean")

    # Primary check: NCHW logits with a singleton channel (segmentation-style
    # head), per-pixel {0,1} float target.  n = 2048, single aligned tile.
    N, C, H, W = 2, 1, 32, 32
    logits = jax.random.normal(k1, (N, C, H, W), dtype=jnp.float32)
    target = (jax.random.uniform(k2, (N, H, W)) > 0.5).astype(jnp.float32)
    out = module({"prediction_out": logits}, target)
    loss = jax.block_until_ready(out["target_loss"])
    ref = _ref_loss(logits, target)
    assert jnp.allclose(loss, ref, rtol=1e-5, atol=1e-6), (loss, ref)

    # Ragged check: element count not a multiple of 128 (exercises the pad
    # fallback and the last-tile mask path).
    logits2 = jax.random.normal(k3, (2, 1, 23, 17), dtype=jnp.float32)
    target2 = (jax.random.uniform(k4, (2, 23, 17)) > 0.5).astype(jnp.float32)
    out2 = module({"prediction_out": logits2}, target2)
    loss2 = jax.block_until_ready(out2["target_loss"])
    ref2 = _ref_loss(logits2, target2)
    assert jnp.allclose(loss2, ref2, rtol=1e-5, atol=1e-6), (loss2, ref2)

    # Multi-tile / multi-chunk check; bf16 logits stream narrow and are
    # upcast in-kernel.  n = 131072 -> 2 parallel tiles x 2 fori chunks.
    logits3 = jax.random.normal(k5, (2, 1, 256, 256), dtype=jnp.bfloat16)
    target3 = (jax.random.uniform(k6, (2, 256, 256)) > 0.5).astype(jnp.float32)
    out3 = module({"prediction_out": logits3}, target3)
    loss3 = jax.block_until_ready(out3["target_loss"])
    ref3 = _ref_loss(logits3, target3)
    assert jnp.allclose(loss3, ref3, rtol=1e-4, atol=1e-5), (loss3, ref3)

    print("KERNEL_OK")
</pallas_src>

<mosaic_0001>
module attributes {stable_mosaic.version = 11 : i64} {
  func.func @_bce_partial_kernel(%arg0: i32, %arg1: memref<16x128xf32, #tpu.memory_space<vmem>>, %arg2: memref<16x128xf32, #tpu.memory_space<vmem>>, %arg3: memref<8x128xf32, #tpu.memory_space<vmem>>) attributes {dimension_semantics = [#tpu.dimension_semantics<parallel>], iteration_bounds = array<i64: 1>, scalar_prefetch = 0 : i64, scratch_operands = 0 : i64, tpu.core_type = #tpu.core_type<tc>, window_params = [{transform_indices = @transform_0, window_bounds = array<i64: 16, 128>}, {transform_indices = @transform_1, window_bounds = array<i64: 16, 128>}, {transform_indices = @transform_2, window_bounds = array<i64: 8, 128>}]} {
    %cst = arith.constant 0.000000e+00 : f32
    %0 = vector.broadcast %cst : f32 to vector<8x128xf32>
    %c0_i32 = arith.constant 0 : i32
    %c16_i32 = arith.constant 16 : i32
    %1 = arith.muli %c0_i32, %c16_i32 : i32
    %2 = tpu.assume_multiple %1, 16 : i32
    %3 = arith.index_cast %2 : i32 to index
    %c0 = arith.constant 0 : index
    %4 = vector.load %arg1[%3, %c0] : memref<16x128xf32, #tpu.memory_space<vmem>>, vector<16x128xf32>
    %5 = arith.index_cast %2 : i32 to index
    %c0_0 = arith.constant 0 : index
    %6 = vector.load %arg2[%5, %c0_0] : memref<16x128xf32, #tpu.memory_space<vmem>>, vector<16x128xf32>
    %cst_1 = arith.constant 0.000000e+00 : f32
    %7 = vector.broadcast %cst_1 : f32 to vector<16x128xf32>
    %8 = arith.maximumf %4, %7 : vector<16x128xf32>
    %9 = arith.mulf %4, %6 : vector<16x128xf32>
    %10 = arith.subf %8, %9 : vector<16x128xf32>
    %11 = math.absf %4 : vector<16x128xf32>
    %cst_2 = arith.constant 0.000000e+00 : f32
    %12 = vector.broadcast %cst_2 : f32 to vector<16x128xf32>
    %13 = arith.subf %12, %11 : vector<16x128xf32>
    %14 = math.exp %13 : vector<16x128xf32>
    %15 = math.log1p %14 : vector<16x128xf32>
    %16 = arith.addf %10, %15 : vector<16x128xf32>
    %17 = vector.shape_cast %16 : vector<16x128xf32> to vector<2x8x128xf32>
    %cst_3 = arith.constant dense<0.000000e+00> : vector<8x128xf32>
    %18 = vector.multi_reduction <add>, %17, %cst_3 [0] : vector<2x8x128xf32> to vector<8x128xf32>
    %19 = arith.addf %0, %18 : vector<8x128xf32>
    %c1_i32 = arith.constant 1 : i32
    %c0_4 = arith.constant 0 : index
    %c0_5 = arith.constant 0 : index
    %20 = vector.load %arg3[%c0_4, %c0_5] : memref<8x128xf32, #tpu.memory_space<vmem>>, vector<8x128xf32>
    tpu.vector_store %arg3[%c0_4, %c0_5], %19 {strides = array<i32>} : memref<8x128xf32, #tpu.memory_space<vmem>>, vector<8x128xf32>,
    return
  }
  func.func @transform_0(%arg0: i32) -> (i32, i32) {
    %c0_i32 = arith.constant 0 : i32
    %c0_i32_0 = arith.constant 0 : i32
    return %arg0, %c0_i32 : i32, i32
  }
  func.func @transform_1(%arg0: i32) -> (i32, i32) {
    %c0_i32 = arith.constant 0 : i32
    %c0_i32_0 = arith.constant 0 : i32
    return %arg0, %c0_i32 : i32, i32
  }
  func.func @transform_2(%arg0: i32) -> (i32, i32) {
    %c0_i32 = arith.constant 0 : i32
    %c0_i32_0 = arith.constant 0 : i32
    return %arg0, %c0_i32 : i32, i32
  }
}

</mosaic_0001>

<llo_original>
// kernel: tpu_custom_call.1
$region0: #{tpu_custom_call.1}
  #allocation0 [shape = 'u32[]', space=smem, size = 0x4, offset = 0x4, fixed_abs, tag = 'smem constant byte address 0x4 - core index']
  #allocation1 [shape = 'u32[144,128]{1,0:T(1,128)}', space=vmem, size = 0x12000, scoped, tag = 'internal scratch']
  %s0 = inlined_call_operand.hbm [shape: f32[16,128], index: 0, kind: input, shape index: {}]
  %s1 = inlined_call_operand.hbm [shape: f32[16,128], index: 1, kind: input, shape index: {}]
  %s2 = inlined_call_operand.hbm [shape: f32[8,128], index: 2, kind: output, shape index: {}]
  %s3 = sld [smem:[#allocation0]]
  $region26: #{tpu_custom_call.1} parent=0
    _
  %s5 = ssub.s32 1, %s3
  %s6 = scalar_select 0, %s5, %s3
  $region1: #{tpu_custom_call.1} parent=0
    #allocation2 [shape = 'u8[8192]{0}', space=vmem, size = 0x2000, scoped, tag = 'input window, operand 0, single buffered']
    #allocation3 [shape = 's32[1]{0}', space=sflag, size = 0x4, scoped, tag = 'scoped memory for tpu_custom_call.1']
    #allocation4 [shape = 's32[1]{0}', space=sflag, size = 0x4, scoped, tag = 'scoped memory for tpu_custom_call.1']
    #allocation5 [shape = 'u8[8192]{0}', space=vmem, size = 0x2000, scoped, tag = 'input window, operand 1, single buffered']
    #allocation6 [shape = 's32[1]{0}', space=sflag, size = 0x4, scoped, tag = 'scoped memory for tpu_custom_call.1']
    #allocation7 [shape = 'u8[4096]{0}', space=vmem, size = 0x1000, scoped, tag = 'output window, operand 0, single buffered']
    %7 = vsyncpa [#allocation3], 0
    %8 = vsyncpa [#allocation6], 0
    %9 = vsyncpa [#allocation4], 0
    // Predicated region
    $region2: #{tpu_custom_call.1} parent=1 // pred_check
      _
    $region3: #{tpu_custom_call.1} parent=1 // pred_check_branch
      %11 = sbr.rel (0) target = $region5
    $region4: #{tpu_custom_call.1} parent=1 // pred_region
      %s13 = ssub.s32 256, 256
      %14 = vsyncadd [#allocation3], %s13
      %s15 = sshll.u32 [#allocation2], 4
      %s16 = int_to_ptr.vmem [resolvable:$true] %s15
      %21 = dma.hbm_to_vmem [thread:$0]  %s0, 256, %s16, [#allocation3], 128, 128, 8
    $region5: #{tpu_custom_call.1} parent=1 // pred_fallthru
      _
    // Predicated region
    $region6: #{tpu_custom_call.1} parent=1 // pred_check
      _
    $region7: #{tpu_custom_call.1} parent=1 // pred_check_branch
      %23 = sbr.rel (0) target = $region9
    $region8: #{tpu_custom_call.1} parent=1 // pred_region
      %s25 = ssub.s32 256, 256
      %26 = vsyncadd [#allocation6], %s25
      %s27 = sshll.u32 [#allocation5], 4
      %s28 = int_to_ptr.vmem [resolvable:$true] %s27
      %33 = dma.hbm_to_vmem [thread:$0]  %s1, 256, %s28, [#allocation6], 128, 128, 8
    $region9: #{tpu_custom_call.1} parent=1 // pred_fallthru
      _
    // Predicated region
    $region10: #{tpu_custom_call.1} parent=1 // pred_check
      _
    $region11: #{tpu_custom_call.1} parent=1 // pred_check_branch
      %35 = sbr.rel (0) target = $region13
    $region12: #{tpu_custom_call.1} parent=1 // pred_region
      %36 = dma.done [#allocation3], 256
    $region13: #{tpu_custom_call.1} parent=1 // pred_fallthru
      _
    // Predicated region
    $region14: #{tpu_custom_call.1} parent=1 // pred_check
      _
    $region15: #{tpu_custom_call.1} parent=1 // pred_check_branch
      %38 = sbr.rel (0) target = $region17
    $region16: #{tpu_custom_call.1} parent=1 // pred_region
      %39 = dma.done [#allocation6], 256
    $region17: #{tpu_custom_call.1} parent=1 // pred_fallthru
      _
    %v40 = vld [vmem:[#allocation2] sm:$0xff]
    %v41 = vld [vmem:[#allocation2 + $0x8] sm:$0xff]
    %v42 = vld [vmem:[#allocation5] sm:$0xff]
    %v43 = vld [vmem:[#allocation5 + $0x8] sm:$0xff]
    %v44 = vmax.f32 %v40, 0.0
    %v45 = vmax.f32 %v41, 0.0
    %v46 = vmul.f32 %v40, %v42
    %v47 = vmul.f32 %v41, %v43
    %v48 = vsub.f32 %v44, %v46
    %v49 = vsub.f32 %v45, %v47
    %v50 = vand.u32 2147483647, %v40
    %v51 = vand.u32 2147483647, %v41
    %v52 = vsub.f32 0.0, %v50
    %v53 = vsub.f32 0.0, %v51
    %v54 = vmul.f32 %v52, 1.442695
    %v55 = vpow.pop %v54
    %v56 = vmul.f32 %v53, 1.442695
    %v57 = vpow.pop %v56
    %v58 = vadd.f32 %v55, 1.0
    %v59 = vlog2.pop %v58
    %v60 = vmul.f32 %v59, 0.6931472
    %v61 = vmul.f32 -0.5, %v55
    %v62 = vadd.f32 %v61, 1.0
    %v63 = vmul.f32 %v62, %v55
    %v64 = vand.u32 2147483647, %v55
    %vm65 = vcmp.lt.f32.partialorder %v64, 0.0004427343
    %v66 = vsel %vm65, %v63, %v60
    %v67 = vadd.f32 %v57, 1.0
    %v68 = vlog2.pop %v67
    %v69 = vmul.f32 %v68, 0.6931472
    %v70 = vmul.f32 -0.5, %v57
    %v71 = vadd.f32 %v70, 1.0
    %v72 = vmul.f32 %v71, %v57
    %v73 = vand.u32 2147483647, %v57
    %vm74 = vcmp.lt.f32.partialorder %v73, 0.0004427343
    %v75 = vsel %vm74, %v72, %v69
    %v76 = vadd.f32 %v48, %v66
    %v77 = vadd.f32 %v49, %v75
    %v78 = vadd.f32 %v76, %v77
    %v79 = vadd.f32 %v78, 0.0
    %80 = vst [vmem:[#allocation7] sm:$0xff] %v79
    // Predicated region
    $region18: #{tpu_custom_call.1} parent=1 // pred_check
      _
    $region19: #{tpu_custom_call.1} parent=1 // pred_check_branch
      %82 = sbr.rel (0) target = $region21
    $region20: #{tpu_custom_call.1} parent=1 // pred_region
      %s84 = ssub.s32 128, 128
      %85 = vsyncadd [#allocation4], %s84
      %s87 = sshll.u32 [#allocation7], 4
      %s88 = int_to_ptr.vmem [resolvable:$true] %s87
      %90 = dma.vmem_to_hbm [thread:$0]  %s88, 128, %s2, [#allocation4]
    $region21: #{tpu_custom_call.1} parent=1 // pred_fallthru
      _
    // Predicated region
    $region22: #{tpu_custom_call.1} parent=1 // pred_check
      _
    $region23: #{tpu_custom_call.1} parent=1 // pred_check_branch
      %92 = sbr.rel (0) target = $region25
    $region24: #{tpu_custom_call.1} parent=1 // pred_region
      %93 = dma.done [#allocation4], 128
    $region25: #{tpu_custom_call.1} parent=1 // pred_fallthru
      _
    %94 = vsyncpa [#allocation3], 1
    %95 = vsyncpa [#allocation6], 1
    %96 = vsyncpa [#allocation4], 1

</llo_original>
